<compile_context>
chip_gen: v5e
topology: v5e:2x2
jax: 0.10.0
libtpu: 0.0.40
codegen_flags: <defaults>
</compile_context>

<pallas_src>
import functools

import jax
import jax.numpy as jnp
from jax.experimental import pallas as pl
from jax.experimental.pallas import tpu as pltpu


def _llpfc_loss_kernel(x_ref, y_ref, w_ref, out_ref, acc_ref, *,
                       eps, n_rows, block_rows):
    # x_ref: (TN, C) float, y_ref: (TN, 1) i32, w_ref: (TN, 1) f32
    # out_ref: (1, 1) f32 in SMEM, acc_ref: (2,) f32 SMEM scratch [num, den]
    t = pl.program_id(0)

    @pl.when(t == 0)
    def _init():
        acc_ref[0] = jnp.float32(0.0)
        acc_ref[1] = jnp.float32(0.0)

    x = x_ref[...].astype(jnp.float32)            # (TN, C)
    y = y_ref[...]                                # (TN, 1) int32
    w = w_ref[...].astype(jnp.float32)            # (TN, 1)

    # Validity mask for the padded remainder tile (global row index < N).
    row = jax.lax.broadcasted_iota(jnp.int32, (block_rows, 1), 0)   # (TN, 1)
    valid = (t * block_rows + row) < n_rows                          # (TN, 1)

    # Gather x[i, y[i]]: select-with-where + lane reduction (no one-hot temp).
    col = jax.lax.broadcasted_iota(jnp.int32, x.shape, 1)            # (TN, C)
    picked = jnp.sum(jnp.where(col == y, x, 0.0), axis=1, keepdims=True)  # (TN, 1)

    # Mask padded rows *before* the log so garbage (possibly NaN) cannot leak,
    # then clamp + nll exactly as the PyTorch reference does.
    picked = jnp.where(valid, picked, 1.0)
    picked = jnp.clip(picked, eps, 1.0 - eps)
    neglog = -jnp.log(picked)                                        # (TN, 1)

    w = jnp.where(valid, w, 0.0)

    acc_ref[0] = acc_ref[0] + jnp.sum(neglog * w)   # numerator
    acc_ref[1] = acc_ref[1] + jnp.sum(w)            # denominator

    @pl.when(t == pl.num_programs(0) - 1)
    def _finalize():
        out_ref[0, 0] = acc_ref[0] / acc_ref[1]


def _pick_block_rows(n, c, itemsize):
    """Largest row-tile (multiple of 8, <=512) fitting a conservative VMEM budget."""
    c_pad = ((max(c, 128) + 127) // 128) * 128
    # Per row: double-buffered x tile + double-buffered (TN,1) y/w tiles,
    # which are lane-padded to 128 f32/i32 each.
    per_row = 2 * c_pad * itemsize + 2 * 2 * 128 * 4
    budget = 28 * 1024 * 1024   # headroom under 32 MiB scoped limit (v6e/v7x)
    tn = 512
    while tn > 8 and tn * per_row > budget:
        tn //= 2
    n8 = ((n + 7) // 8) * 8
    return max(8, min(tn, n8))


def llpfc_loss(x, y, w, eps=1e-08, block_rows=None):
    """Pallas TPU implementation of LLPFCLoss.forward."""
    n, c = x.shape
    # Stream x in its native dtype (bf16 stays bf16); upcast inside the kernel.
    if x.dtype not in (jnp.float32, jnp.bfloat16):
        x = x.astype(jnp.float32)
    y2 = y.reshape(n, 1).astype(jnp.int32)
    w2 = w.reshape(n, 1).astype(jnp.float32)

    itemsize = jnp.dtype(x.dtype).itemsize
    if block_rows is None:
        block_rows = _pick_block_rows(n, c, itemsize)
    else:
        block_rows = max(8, ((int(block_rows) + 7) // 8) * 8)

    grid = (pl.cdiv(n, block_rows),)

    kernel = functools.partial(
        _llpfc_loss_kernel, eps=float(eps), n_rows=n, block_rows=block_rows)

    out = pl.pallas_call(
        kernel,
        out_shape=jax.ShapeDtypeStruct((1, 1), jnp.float32),
        grid=grid,
        in_specs=[
            pl.BlockSpec((block_rows, c), lambda i: (i, 0)),
            pl.BlockSpec((block_rows, 1), lambda i: (i, 0)),
            pl.BlockSpec((block_rows, 1), lambda i: (i, 0)),
        ],
        out_specs=pl.BlockSpec(memory_space=pltpu.MemorySpace.SMEM),
        scratch_shapes=[pltpu.SMEM((2,), jnp.float32)],
        compiler_params=pltpu.CompilerParams(
            dimension_semantics=("arbitrary",),
            vmem_limit_bytes=32 * 1024 * 1024,
        ),
        cost_estimate=pl.CostEstimate(
            flops=2 * n * c,
            transcendentals=n,
            bytes_accessed=n * c * itemsize + 2 * n * 4 + 4,
        ),
    )(x, y2, w2)
    return out[0, 0]


def _reference_loss(x, y, w, eps=1e-08):
    # Pure-JAX reference mirroring the PyTorch loss_f.
    xc = jnp.clip(x.astype(jnp.float32), eps, 1.0 - eps)
    unweighted = -jnp.log(xc)[jnp.arange(x.shape[0]), y]
    w_norm = w / jnp.sum(w)
    return jnp.sum(unweighted * w_norm)


if __name__ == "__main__":
    key = jax.random.PRNGKey(0)
    k1, k2, k3 = jax.random.split(key, 3)

    # Small shapes; N not a multiple of the block so the remainder-mask path
    # and the multi-step accumulation are both exercised.
    N, C = 20, 16
    logits = jax.random.normal(k1, (N, C), dtype=jnp.float32)
    x = jax.nn.softmax(logits, axis=-1)          # rows on the simplex
    y = jax.random.randint(k2, (N,), 0, C, dtype=jnp.int32)
    w = jax.random.uniform(k3, (N,), dtype=jnp.float32, minval=0.1, maxval=1.0)

    loss = llpfc_loss(x, y, w, block_rows=8)     # grid of 3 tiles, last one partial
    loss = jax.block_until_ready(loss)

    ref = _reference_loss(x, y, w)
    assert jnp.allclose(loss, ref, rtol=1e-5, atol=1e-6), (loss, ref)

    print("KERNEL_OK")
</pallas_src>

<mosaic_0001>
module attributes {stable_mosaic.version = 11 : i64} {
  func.func @_llpfc_loss_kernel(%arg0: i32, %arg1: memref<8x16xf32, #tpu.memory_space<vmem>>, %arg2: memref<8x1xi32, #tpu.memory_space<vmem>>, %arg3: memref<8x1xf32, #tpu.memory_space<vmem>>, %arg4: memref<1x1xf32, #tpu.memory_space<smem>>, %arg5: memref<2xf32, #tpu.memory_space<smem>>) attributes {dimension_semantics = [#tpu.dimension_semantics<arbitrary>], iteration_bounds = array<i64: 3>, scalar_prefetch = 0 : i64, scratch_operands = 1 : i64, tpu.core_type = #tpu.core_type<tc>, window_params = [{transform_indices = @transform_0, window_bounds = array<i64: 8, 16>}, {transform_indices = @transform_1, window_bounds = array<i64: 8, 1>}, {transform_indices = @transform_2, window_bounds = array<i64: 8, 1>}, {transform_indices = @transform_3, window_bounds = array<i64: 1, 1>}]} {
    %c0_i32 = arith.constant 0 : i32
    %0 = arith.cmpi eq, %arg0, %c0_i32 : i32
    %1 = arith.extui %0 : i1 to i32
    %c0_i32_0 = arith.constant 0 : i32
    %2 = arith.cmpi ne, %1, %c0_i32_0 : i32
    scf.if %2 {
      %cst_18 = arith.constant 0.000000e+00 : f32
      %c0_19 = arith.constant 0 : index
      %48 = memref.load %arg5[%c0_19] : memref<2xf32, #tpu.memory_space<smem>>
      memref.store %cst_18, %arg5[%c0_19] : memref<2xf32, #tpu.memory_space<smem>>
      %cst_20 = arith.constant 0.000000e+00 : f32
      %c1_21 = arith.constant 1 : index
      %49 = memref.load %arg5[%c1_21] : memref<2xf32, #tpu.memory_space<smem>>
      memref.store %cst_20, %arg5[%c1_21] : memref<2xf32, #tpu.memory_space<smem>>
    } else {
    }
    %c0 = arith.constant 0 : index
    %c0_1 = arith.constant 0 : index
    %3 = vector.load %arg1[%c0, %c0_1] : memref<8x16xf32, #tpu.memory_space<vmem>>, vector<8x16xf32>
    %c0_2 = arith.constant 0 : index
    %c0_3 = arith.constant 0 : index
    %4 = vector.load %arg2[%c0_2, %c0_3] : memref<8x1xi32, #tpu.memory_space<vmem>>, vector<8x1xi32>
    %c0_4 = arith.constant 0 : index
    %c0_5 = arith.constant 0 : index
    %5 = vector.load %arg3[%c0_4, %c0_5] : memref<8x1xf32, #tpu.memory_space<vmem>>, vector<8x1xf32>
    %6 = tpu.iota {dimensions = array<i32: 0>} : vector<8x1xi32>
    %c8_i32 = arith.constant 8 : i32
    %7 = arith.muli %arg0, %c8_i32 : i32
    %8 = vector.broadcast %7 : i32 to vector<8x1xi32>
    %9 = arith.addi %8, %6 : vector<8x1xi32>
    %c20_i32 = arith.constant 20 : i32
    %10 = vector.broadcast %c20_i32 : i32 to vector<8x1xi32>
    %11 = arith.cmpi slt, %9, %10 : vector<8x1xi32>
    %12 = tpu.iota {dimensions = array<i32: 1>} : vector<8x16xi32>
    %13 = vector.broadcast %4 : vector<8x1xi32> to vector<8x16xi32>
    %14 = arith.cmpi eq, %12, %13 : vector<8x16xi32>
    %cst = arith.constant 0.000000e+00 : f32
    %15 = vector.broadcast %cst : f32 to vector<8x16xf32>
    %16 = arith.select %14, %3, %15 : vector<8x16xi1>, vector<8x16xf32>
    %cst_6 = arith.constant dense<0.000000e+00> : vector<8xf32>
    %17 = vector.multi_reduction <add>, %16, %cst_6 [1] : vector<8x16xf32> to vector<8xf32>
    %18 = vector.shape_cast %17 : vector<8xf32> to vector<8x1xf32>
    %cst_7 = arith.constant 1.000000e+00 : f32
    %19 = vector.broadcast %cst_7 : f32 to vector<8x1xf32>
    %20 = arith.select %11, %18, %19 : vector<8x1xi1>, vector<8x1xf32>
    %cst_8 = arith.constant 9.99999993E-9 : f32
    %cst_9 = arith.constant 1.000000e+00 : f32
    %21 = vector.broadcast %cst_8 : f32 to vector<8x1xf32>
    %22 = arith.maximumf %21, %20 : vector<8x1xf32>
    %23 = vector.broadcast %cst_9 : f32 to vector<8x1xf32>
    %24 = arith.minimumf %23, %22 : vector<8x1xf32>
    %25 = math.log %24 : vector<8x1xf32>
    %cst_10 = arith.constant 0.000000e+00 : f32
    %26 = vector.broadcast %cst_10 : f32 to vector<8x1xf32>
    %27 = arith.subf %26, %25 : vector<8x1xf32>
    %cst_11 = arith.constant 0.000000e+00 : f32
    %28 = vector.broadcast %cst_11 : f32 to vector<8x1xf32>
    %29 = arith.select %11, %5, %28 : vector<8x1xi1>, vector<8x1xf32>
    %c0_12 = arith.constant 0 : index
    %30 = memref.load %arg5[%c0_12] : memref<2xf32, #tpu.memory_space<smem>>
    %31 = arith.mulf %27, %29 : vector<8x1xf32>
    %32 = vector.shape_cast %31 : vector<8x1xf32> to vector<1x8x1xf32>
    %cst_13 = arith.constant dense<0.000000e+00> : vector<1xf32>
    %33 = vector.multi_reduction <add>, %32, %cst_13 [1, 2] : vector<1x8x1xf32> to vector<1xf32>
    %34 = vector.shape_cast %33 : vector<1xf32> to vector<1x1x1xf32>
    %35 = vector.extract %34[0, 0, 0] : f32 from vector<1x1x1xf32>
    %36 = arith.addf %30, %35 : f32
    %c0_14 = arith.constant 0 : index
    %37 = memref.load %arg5[%c0_14] : memref<2xf32, #tpu.memory_space<smem>>
    memref.store %36, %arg5[%c0_14] : memref<2xf32, #tpu.memory_space<smem>>
    %c1 = arith.constant 1 : index
    %38 = memref.load %arg5[%c1] : memref<2xf32, #tpu.memory_space<smem>>
    %39 = vector.shape_cast %29 : vector<8x1xf32> to vector<1x8x1xf32>
    %cst_15 = arith.constant dense<0.000000e+00> : vector<1xf32>
    %40 = vector.multi_reduction <add>, %39, %cst_15 [1, 2] : vector<1x8x1xf32> to vector<1xf32>
    %41 = vector.shape_cast %40 : vector<1xf32> to vector<1x1x1xf32>
    %42 = vector.extract %41[0, 0, 0] : f32 from vector<1x1x1xf32>
    %43 = arith.addf %38, %42 : f32
    %c1_16 = arith.constant 1 : index
    %44 = memref.load %arg5[%c1_16] : memref<2xf32, #tpu.memory_space<smem>>
    memref.store %43, %arg5[%c1_16] : memref<2xf32, #tpu.memory_space<smem>>
    %c2_i32 = arith.constant 2 : i32
    %45 = arith.cmpi eq, %arg0, %c2_i32 : i32
    %46 = arith.extui %45 : i1 to i32
    %c0_i32_17 = arith.constant 0 : i32
    %47 = arith.cmpi ne, %46, %c0_i32_17 : i32
    scf.if %47 {
      %c0_18 = arith.constant 0 : index
      %48 = memref.load %arg5[%c0_18] : memref<2xf32, #tpu.memory_space<smem>>
      %c1_19 = arith.constant 1 : index
      %49 = memref.load %arg5[%c1_19] : memref<2xf32, #tpu.memory_space<smem>>
      %50 = arith.divf %48, %49 : f32
      %c0_20 = arith.constant 0 : index
      %c0_21 = arith.constant 0 : index
      %51 = memref.load %arg4[%c0_20, %c0_21] : memref<1x1xf32, #tpu.memory_space<smem>>
      memref.store %50, %arg4[%c0_20, %c0_21] : memref<1x1xf32, #tpu.memory_space<smem>>
    } else {
    }
    return
  }
  func.func @transform_0(%arg0: i32) -> (i32, i32) {
    %c0_i32 = arith.constant 0 : i32
    %c0_i32_0 = arith.constant 0 : i32
    return %arg0, %c0_i32 : i32, i32
  }
  func.func @transform_1(%arg0: i32) -> (i32, i32) {
    %c0_i32 = arith.constant 0 : i32
    %c0_i32_0 = arith.constant 0 : i32
    return %arg0, %c0_i32 : i32, i32
  }
  func.func @transform_2(%arg0: i32) -> (i32, i32) {
    %c0_i32 = arith.constant 0 : i32
    %c0_i32_0 = arith.constant 0 : i32
    return %arg0, %c0_i32 : i32, i32
  }
  func.func @transform_3(%arg0: i32) -> (i32, i32) {
    %c0_i32 = arith.constant 0 : i32
    %c0_i32_0 = arith.constant 0 : i32
    %c0_i32_1 = arith.constant 0 : i32
    return %c0_i32, %c0_i32_0 : i32, i32
  }
}

</mosaic_0001>

<llo_original>
// kernel: tpu_custom_call.1
$region0: #{tpu_custom_call.1}
  #allocation0 [shape = 'u32[]', space=smem, size = 0x4, offset = 0x4, fixed_abs, tag = 'smem constant byte address 0x4 - core index']
  #allocation1 [shape = 'u32[72,128]{1,0:T(1,128)}', space=vmem, size = 0x9000, scoped, tag = 'internal scratch']
  #allocation2 [shape = 'f32[2]{0:T(128)}', space=smem, size = 0x200, scoped, tag = 'scratch operand']
  %s0 = inlined_call_operand.vmem [shape: f32[20,16], index: 0, kind: input, shape index: {}]
  %s1 = inlined_call_operand.vmem [shape: s32[20,1], index: 1, kind: input, shape index: {}]
  %s2 = inlined_call_operand.vmem [shape: f32[20,1], index: 2, kind: input, shape index: {}]
  %s3 = inlined_call_operand.hbm [shape: f32[1,1], index: 3, kind: output, shape index: {}]
  %s4 = sld [smem:[#allocation0]]
  $region53: #{tpu_custom_call.1} parent=0
    _
  %s6 = ssub.s32 1, %s4
  %s7 = scalar_select 0, %s6, %s4
  $region1: #{tpu_custom_call.1} parent=0
    #allocation3 [shape = 'u8[512]{0}', space=smem, size = 0x200, scoped, tag = 'output window, operand 0, single buffered']
    #allocation4 [shape = 's32[2]{0}', space=sflag, size = 0x8, scoped, tag = 'scoped memory for tpu_custom_call.1']
    %8 = vsyncpa [#allocation4], 0
    loop: start=0, step=1, limit=5
    $region2: #{tpu_custom_call.1} parent=1 // loop_pre_header
      _
    $region3: #{tpu_custom_call.1} parent=1 // loop_header
      %s10 = sphi 0, %s14
      %p11 = scmp.ge.s32.totalorder %s10, 5
      %s20 = sphi 0, %s22
      %s23 = sphi 0, %s20
      %s24 = sphi 0, %s23
      %s40 = sphi 0, %s24
      %s46 = sphi 0, %s48
      %s49 = sphi 0, %s46
      %s50 = sphi 0, %s49
      %s66 = sphi 0, %s50
      %s72 = sphi 0, %s74
      %s75 = sphi 0, %s72
      %s76 = sphi 0, %s75
      %s92 = sphi 0, %s76
      %s96 = sphi 0, %s96
      %s98 = sphi 0, %s96
      %s99 = sphi 0, %s98
      %s113 = sphi 0, %s99
    $region4: #{tpu_custom_call.1} parent=1 // loop_header_branch
      %13 = sbr.rel (%p11) target = $region8
    $region5: #{tpu_custom_call.1} parent=1 // loop_body
      %s15 = ssub.s32 %s10, 1
      %s16 = ssub.s32 %s10, 2
      %s17 = sadd.s32 %s10, 1
      %s18 = ssub.s32 %s10, %s17
      %p19 = scmp.eq.s32.totalorder %s18, 0
      %s21 = sadd.s32 %s20, 1
      %s22 = scalar_select %p19, %s20, %s21
      %p25 = pneg %p19
      %p26 = scmp.eq.s32.totalorder %s10, 2
      %p27 = por %p25, %p26
      %p28 = scmp.ne.s32.totalorder %s20, %s23
      %p29 = scmp.eq.s32.totalorder %s10, 0
      %p30 = por %p28, %p29
      %p31 = scmp.ne.s32.totalorder %s20, %s23
      %p32 = scmp.eq.s32.totalorder %s15, 2
      %p33 = por %p31, %p32
      %p34 = scmp.ne.s32.totalorder %s23, %s24
      %p35 = scmp.eq.s32.totalorder %s15, 0
      %p36 = por %p34, %p35
      %p37 = scmp.ne.s32.totalorder %s23, %s24
      %p38 = scmp.eq.s32.totalorder %s16, 2
      %p39 = por %p37, %p38
      %p41 = scmp.ne.s32.totalorder %s24, %s40
      %p42 = scmp.eq.s32.totalorder %s16, 0
      %p43 = por %p41, %p42
      %s44 = ssub.s32 %s10, %s17
      %p45 = scmp.eq.s32.totalorder %s44, 0
      %s47 = sadd.s32 %s46, 1
      %s48 = scalar_select %p45, %s46, %s47
      %p51 = pneg %p45
      %p52 = scmp.eq.s32.totalorder %s10, 2
      %p53 = por %p51, %p52
      %p54 = scmp.ne.s32.totalorder %s46, %s49
      %p55 = scmp.eq.s32.totalorder %s10, 0
      %p56 = por %p54, %p55
      %p57 = scmp.ne.s32.totalorder %s46, %s49
      %p58 = scmp.eq.s32.totalorder %s15, 2
      %p59 = por %p57, %p58
      %p60 = scmp.ne.s32.totalorder %s49, %s50
      %p61 = scmp.eq.s32.totalorder %s15, 0
      %p62 = por %p60, %p61
      %p63 = scmp.ne.s32.totalorder %s49, %s50
      %p64 = scmp.eq.s32.totalorder %s16, 2
      %p65 = por %p63, %p64
      %p67 = scmp.ne.s32.totalorder %s50, %s66
      %p68 = scmp.eq.s32.totalorder %s16, 0
      %p69 = por %p67, %p68
      %s70 = ssub.s32 %s10, %s17
      %p71 = scmp.eq.s32.totalorder %s70, 0
      %s73 = sadd.s32 %s72, 1
      %s74 = scalar_select %p71, %s72, %s73
      %p77 = pneg %p71
      %p78 = scmp.eq.s32.totalorder %s10, 2
      %p79 = por %p77, %p78
      %p80 = scmp.ne.s32.totalorder %s72, %s75
      %p81 = scmp.eq.s32.totalorder %s10, 0
      %p82 = por %p80, %p81
      %p83 = scmp.ne.s32.totalorder %s72, %s75
      %p84 = scmp.eq.s32.totalorder %s15, 2
      %p85 = por %p83, %p84
      %p86 = scmp.ne.s32.totalorder %s75, %s76
      %p87 = scmp.eq.s32.totalorder %s15, 0
      %p88 = por %p86, %p87
      %p89 = scmp.ne.s32.totalorder %s75, %s76
      %p90 = scmp.eq.s32.totalorder %s16, 2
      %p91 = por %p89, %p90
      %p93 = scmp.ne.s32.totalorder %s76, %s92
      %p94 = scmp.eq.s32.totalorder %s16, 0
      %p95 = por %p93, %p94
      %s97 = sadd.s32 %s96, 1
      %p100 = scmp.eq.s32.totalorder %s10, 2
      %p101 = scmp.ne.s32.totalorder %s96, %s98
      %p102 = scmp.eq.s32.totalorder %s10, 0
      %p103 = por %p101, %p102
      %p104 = scmp.ne.s32.totalorder %s96, %s98
      %p105 = scmp.eq.s32.totalorder %s15, 2
      %p106 = por %p104, %p105
      %p107 = scmp.ne.s32.totalorder %s98, %s99
      %p108 = scmp.eq.s32.totalorder %s15, 0
      %p109 = por %p107, %p108
      %p110 = scmp.ne.s32.totalorder %s98, %s99
      %p111 = scmp.eq.s32.totalorder %s16, 2
      %p112 = por %p110, %p111
      %p114 = scmp.ne.s32.totalorder %s99, %s113
      %p115 = scmp.eq.s32.totalorder %s16, 0
      %p116 = por %p114, %p115
      %p117 = scmp.le.s32.totalorder 1, %s10
      %p118 = scmp.lt.s32.totalorder %s10, 4
      %p119 = pnand %p117, %p118
      %p120 = pneg %p119
      // Predicated region
      $region9: #{tpu_custom_call.1} parent=5 // pred_check
        _
      $region10: #{tpu_custom_call.1} parent=5 // pred_check_branch
        %122 = sbr.rel (%p119) target = $region12
      $region11: #{tpu_custom_call.1} parent=5 // pred_region
        %s123 = ssub.s32 %s10, 1
      $region12: #{tpu_custom_call.1} parent=5 // pred_fallthru
        _
      %p124 = scmp.lt.s32.totalorder %s10, 3
      // Predicated region
      $region13: #{tpu_custom_call.1} parent=5 // pred_check
        %p125 = pneg %p124
      $region14: #{tpu_custom_call.1} parent=5 // pred_check_branch
        %127 = sbr.rel (%p125) target = $region16
      $region15: #{tpu_custom_call.1} parent=5 // pred_region
        // Predicated region
        $region17: #{tpu_custom_call.1} parent=15 // pred_check
          %p128 = pneg %p30
        $region18: #{tpu_custom_call.1} parent=15 // pred_check_branch
          %130 = sbr.rel (%p128) target = $region20
        $region19: #{tpu_custom_call.1} parent=15 // pred_region
          %p131 = scmp.lt.s32.totalorder %s10, 2
          %s132 = scalar_select %p131, %s10, 2
          %s133 = smul.addr %s132, 8
          %s134 = scalar_lea.vmem %s0, %s133
        $region20: #{tpu_custom_call.1} parent=15 // pred_fallthru
          _
        // Predicated region
        $region21: #{tpu_custom_call.1} parent=15 // pred_check
          %p135 = pneg %p56
        $region22: #{tpu_custom_call.1} parent=15 // pred_check_branch
          %137 = sbr.rel (%p135) target = $region24
        $region23: #{tpu_custom_call.1} parent=15 // pred_region
          %p138 = scmp.lt.s32.totalorder %s10, 2
          %s139 = scalar_select %p138, %s10, 2
          %s140 = smul.addr %s139, 8
          %s141 = scalar_lea.vmem %s1, %s140
        $region24: #{tpu_custom_call.1} parent=15 // pred_fallthru
          _
        // Predicated region
        $region25: #{tpu_custom_call.1} parent=15 // pred_check
          %p142 = pneg %p82
        $region26: #{tpu_custom_call.1} parent=15 // pred_check_branch
          %144 = sbr.rel (%p142) target = $region28
        $region27: #{tpu_custom_call.1} parent=15 // pred_region
          %p145 = scmp.lt.s32.totalorder %s10, 2
          %s146 = scalar_select %p145, %s10, 2
          %s147 = smul.addr %s146, 8
          %s148 = scalar_lea.vmem %s2, %s147
        $region28: #{tpu_custom_call.1} parent=15 // pred_fallthru
          _
      $region16: #{tpu_custom_call.1} parent=5 // pred_fallthru
        _
      %p149 = scmp.le.s32.totalorder 1, %s10
      %p150 = scmp.lt.s32.totalorder %s10, 4
      %p151 = pnand %p149, %p150
      %p152 = pneg %p151
      // Predicated region
      $region29: #{tpu_custom_call.1} parent=5 // pred_check
        _
      $region30: #{tpu_custom_call.1} parent=5 // pred_check_branch
        %154 = sbr.rel (%p151) target = $region32
      $region31: #{tpu_custom_call.1} parent=5 // pred_region
        %s155 = ssub.s32 %s10, 1
        %p156 = scmp.lt.s32.totalorder %s15, 2
        %s157 = scalar_select %p156, %s15, 2
        %s158 = smul.addr %s157, 8
        %s159 = scalar_lea.vmem %s0, %s158
        %p160 = pneg %p36
        %p161 = pneg %p33
        %p162 = scmp.lt.s32.totalorder %s15, 2
        %s163 = scalar_select %p162, %s15, 2
        %s164 = smul.addr %s163, 8
        %s165 = scalar_lea.vmem %s1, %s164
        %p166 = pneg %p62
        %p167 = pneg %p59
        %p168 = scmp.lt.s32.totalorder %s15, 2
        %s169 = scalar_select %p168, %s15, 2
        %s170 = smul.addr %s169, 8
        %s171 = scalar_lea.vmem %s2, %s170
        %p172 = pneg %p88
        %p173 = pneg %p85
        %p174 = pneg %p109
        %p175 = pneg %p106
        %p176 = scmp.lt.s32.totalorder %s15, 2
        %s177 = scalar_select %p176, %s15, 2
        %s178 = smul.addr %s177, 8
        %s179 = scalar_lea.vmem %s0, %s178
        %p180 = scmp.lt.s32.totalorder %s15, 2
        %s181 = scalar_select %p180, %s15, 2
        %s182 = smul.addr %s181, 8
        %s183 = scalar_lea.vmem %s1, %s182
        %p184 = scmp.lt.s32.totalorder %s15, 2
        %s185 = scalar_select %p184, %s15, 2
        %s186 = smul.addr %s185, 8
        %s187 = scalar_lea.vmem %s2, %s186
        %p188 = scmp.eq.s32.totalorder %s15, 0
        // Predicated region
        $region33: #{tpu_custom_call.1} parent=31 // pred_check
          %p189 = pneg %p188
        $region34: #{tpu_custom_call.1} parent=31 // pred_check_branch
          %191 = sbr.rel (%p189) target = $region36
        $region35: #{tpu_custom_call.1} parent=31 // pred_region
          %s192 = scalar_lea.smem [#allocation2], 0
          %193 = sst [smem:[%s192]] 0.0
          %s194 = scalar_lea.smem [#allocation2], 1
          %195 = sst [smem:[%s194]] 0.0
        $region36: #{tpu_custom_call.1} parent=31 // pred_fallthru
          _
        %v196 = vld [vmem:[%s179] sm:$0xff]
        %v197 = vld [vmem:[%s183] sm:$0xff]
        %v198 = vld [vmem:[%s187] sm:$0xff]
        %v199 = vlaneseq
        %v200 = vshrl.u32 %v199, 7
        %s201 = smul.u32 %s15, 8
        %v202 = vstv %s201
        %v203 = vadd.s32 %v202, %v200
        %vm204 = vcmp.lt.s32.totalorder %v203, 20
        %v205 = vlaneseq
        %v206 = vand.u32 %v205, 127
        %207 = vset.pattern.permute.xlu0 0
        %208 = vperm.xlu0 %207, %v197
        %v209 = vpop.permute.xlu0 %208
        %vm210 = vcmp.eq.s32.totalorder %v206, %v209
        %v211 = vsel %vm210, %v196, 0.0
        %vm212 = vcmask 130048
        %v213 = vsel %vm212, %v211, 0.0
        %214 = vadd.xlane.f32.xlu0 %v213
        %v215 = vpop.xlane.xlu0 %214
        %v216 = vsel %vm204, %v215, 1.0
        %v217 = vmax.f32 %v216, 1e-08
        %v218 = vmin.f32 %v217, 1.0
        %v219 = vlog2.pop %v218
        %v220 = vmul.f32 %v219, 0.6931472
        %v221 = vsub.f32 0.0, %v220
        %v222 = vsel %vm204, %v198, 0.0
        %s223 = sld [smem:[#allocation2]]
        %v224 = vmul.f32 %v221, %v222
        %vm225 = vcmask 7168
        %v226 = vsel %vm225, %v224, 0.0
        %227 = vadd.xlane.f32.xlu0 %v226
        %v228 = vpop.xlane.xlu0 %227
        %v229 = vrot.slane %v228, 4
        %v230 = vadd.f32 %v228, %v229
        %v231 = vrot.slane %v230, 2
        %v232 = vadd.f32 %v230, %v231
        %v233 = vrot.slane %v232, 1
        %v234 = vadd.f32 %v232, %v233
        %s235 = vtos %v234
        %s236 = sadd.f32 %s223, %s235
        %s237 = scalar_lea.smem [#allocation2], 0
        %238 = sst [smem:[%s237]] %s236
        %s239 = sld [smem:[#allocation2 + $0x1]]
        %v240 = vsel %vm225, %v222, 0.0
        %241 = vadd.xlane.f32.xlu0 %v240
        %v242 = vpop.xlane.xlu0 %241
        %v243 = vrot.slane %v242, 4
        %v244 = vadd.f32 %v242, %v243
        %v245 = vrot.slane %v244, 2
        %v246 = vadd.f32 %v244, %v245
        %v247 = vrot.slane %v246, 1
        %v248 = vadd.f32 %v246, %v247
        %s249 = vtos %v248
        %s250 = sadd.f32 %s239, %s249
        %s251 = scalar_lea.smem [#allocation2], 1
        %252 = sst [smem:[%s251]] %s250
        %p253 = scmp.eq.s32.totalorder %s15, 2
        // Predicated region
        $region37: #{tpu_custom_call.1} parent=31 // pred_check
          %p254 = pneg %p253
        $region38: #{tpu_custom_call.1} parent=31 // pred_check_branch
          %256 = sbr.rel (%p254) target = $region40
        $region39: #{tpu_custom_call.1} parent=31 // pred_region
          %s257 = sld [smem:[#allocation2]]
          %s258 = sld [smem:[#allocation2 + $0x1]]
          %v259 = vstv %s258
          %v260 = vrcp.pop %v259
          %v261 = vmul.f32 %v259, %v260
          %v262 = vsub.f32 1.0, %v261
          %v263 = vmul.f32 %v260, %v262
          %v264 = vadd.f32 %v260, %v263
          %vm265 = vweird.f32 %v259
          %vm266 = vweird.f32 %v260
          %vm267 = vmor %vm265, %vm266
          %v268 = vsel %vm267, %v260, %v264
          %v269 = vand.u32 2147483647, %v259
          %vm270 = vcmp.eq.f32.partialorder %v269, 8.507059e+37
          %v271 = vand.u32 %v259, 2147483648
          %v272 = vor.u32 1.1754944e-38, %v271
          %v273 = vsel %vm270, %v272, %v268
          %s274 = vtos %v273
          %s275 = smul.f32 %s257, %s274
          %s276 = scalar_lea.smem [#allocation3], 0
          %277 = sst [smem:[%s276]] %s275
        $region40: #{tpu_custom_call.1} parent=31 // pred_fallthru
          _
        // Predicated region
        $region41: #{tpu_custom_call.1} parent=31 // pred_check
          %p278 = pneg %p106
        $region42: #{tpu_custom_call.1} parent=31 // pred_check_branch
          %280 = sbr.rel (%p278) target = $region44
        $region43: #{tpu_custom_call.1} parent=31 // pred_region
          %282 = vsyncadd [#allocation4], 0
          %s284 = sshll.u32 %s3, 4
          %s285 = int_to_ptr.hbm [resolvable:$true] %s284
          %287 = dma.smem_to_hbm [#allocation3], 16, %s285, [#allocation4]
        $region44: #{tpu_custom_call.1} parent=31 // pred_fallthru
          _
        // Predicated region
        $region45: #{tpu_custom_call.1} parent=31 // pred_check
          %p288 = pneg %p106
        $region46: #{tpu_custom_call.1} parent=31 // pred_check_branch
          %290 = sbr.rel (%p288) target = $region48
        $region47: #{tpu_custom_call.1} parent=31 // pred_region
          %292 = dma.done [#allocation4], 16
        $region48: #{tpu_custom_call.1} parent=31 // pred_fallthru
          _
        %293 = sfence
      $region32: #{tpu_custom_call.1} parent=5 // pred_fallthru
        _
      %p294 = scmp.le.s32.totalorder 2, %s10
      // Predicated region
      $region49: #{tpu_custom_call.1} parent=5 // pred_check
        %p295 = pneg %p294
      $region50: #{tpu_custom_call.1} parent=5 // pred_check_branch
        %297 = sbr.rel (%p295) target = $region52
      $region51: #{tpu_custom_call.1} parent=5 // pred_region
        %s298 = ssub.s32 %s10, 2
      $region52: #{tpu_custom_call.1} parent=5 // pred_fallthru
        _
    $region6: #{tpu_custom_call.1} parent=1 // loop_footer
      %s14 = sadd.s32 1, %s10
    $region7: #{tpu_custom_call.1} parent=1 // loop_footer_branch
      %9 = sbr.rel target = $region3
    $region8: #{tpu_custom_call.1} parent=1 // loop_exit
      _
    %299 = vsyncpa [#allocation4], 1
    %s300 = scalar_lea.sflag [#allocation4], 1
    %301 = vsyncpa %s300, 1

</llo_original>
